<compile_context>
chip_gen: v5e
topology: v5e:2x2
jax: 0.10.0
libtpu: 0.0.40
codegen_flags: <defaults>
</compile_context>

<pallas_src>
import jax
import jax.numpy as jnp
from jax.experimental import pallas as pl
from jax.experimental.pallas import tpu as pltpu


HIDDEN = 50
N_STACK = 2
SOUND_CHANNELS = 3
SOUND_LENGTH = 2
OUT_DIM = N_STACK * SOUND_CHANNELS * SOUND_LENGTH  # 12
LANES = 128                                        # padded hidden/output width
BN_EPS = 1e-5
TB_CAP = 2048                                      # max batch tile


# -----------------------------------------------------------------------------
# Kernel
# -----------------------------------------------------------------------------
def sound_decoder_kernel(z_ref, w1_ref, w2_ref, w3_ref, b_ref, out_ref):
    # z_ref:  (TB, latent)   bf16  (pre-cast in wrapper)
    # w*_ref: (in_pad, 128)  bf16  (BN already folded into w1/w2, b1/b2)
    # b_ref:  (3, 128)       f32   rows = [b1, b2, b3], zero-padded
    # out_ref:(TB, 128)      bf16  sigmoid(fc3(...)); padded lanes hold 0.5
    h = jnp.dot(z_ref[...], w1_ref[...], preferred_element_type=jnp.float32)
    h = jnp.maximum(h + b_ref[0:1, :], 0.0)

    h = jnp.dot(h.astype(jnp.bfloat16), w2_ref[...],
                preferred_element_type=jnp.float32)
    h = jnp.maximum(h + b_ref[1:2, :], 0.0)

    h = jnp.dot(h.astype(jnp.bfloat16), w3_ref[...],
                preferred_element_type=jnp.float32)
    h = h + b_ref[2:3, :]

    # sigmoid = 1 / (1 + exp(-h)); exp + approx reciprocal both run on the EUP
    # slot, keeping the VPU (binding slot after the bf16-output change) light.
    out_ref[...] = pl.reciprocal(1.0 + jnp.exp(-h),
                                 approx=True).astype(out_ref.dtype)


# -----------------------------------------------------------------------------
# One-time parameter preparation (fold BN, transpose, pad, pack, bf16)
# -----------------------------------------------------------------------------
def prepare_params(params):
    def fold_bn(w, b, gamma, beta, mean, var):
        # inference-mode BN folded into the preceding Linear (w: (out, in))
        scale = gamma / jnp.sqrt(var + BN_EPS)
        return w * scale[:, None], (b - mean) * scale + beta

    w1, b1 = fold_bn(params["fc1_w"], params["fc1_b"],
                     params["bn1_gamma"], params["bn1_beta"],
                     params["bn1_mean"], params["bn1_var"])
    w2, b2 = fold_bn(params["fc2_w"], params["fc2_b"],
                     params["bn2_gamma"], params["bn2_beta"],
                     params["bn2_mean"], params["bn2_var"])
    w3, b3 = params["fc3_w"], params["fc3_b"]

    def pad_wt(w, in_pad):
        # (out, in) torch layout -> (in_pad, LANES), zero padded, bf16
        wt = jnp.transpose(w)
        full = jnp.zeros((in_pad, LANES), jnp.float32)
        full = full.at[:wt.shape[0], :wt.shape[1]].set(wt)
        return full.astype(jnp.bfloat16)

    def pad_b(b):
        return jnp.zeros((LANES,), jnp.float32).at[:b.shape[0]].set(b)

    latent_dim = params["fc1_w"].shape[1]
    return {
        "w1": pad_wt(w1, latent_dim),          # (latent, 128) bf16
        "w2": pad_wt(w2, LANES),               # (128, 128)    bf16
        "w3": pad_wt(w3, LANES),               # (128, 128)    bf16
        "b":  jnp.stack([pad_b(b1), pad_b(b2), pad_b(b3)], axis=0),  # (3,128) f32
    }


# -----------------------------------------------------------------------------
# Forward wrapper
# -----------------------------------------------------------------------------
def sound_decoder_forward(z, prepped):
    B, latent_dim = z.shape

    # Pre-cast activations to bf16 (halves z DMA; removes in-kernel cast).
    z = z.astype(jnp.bfloat16)

    # Batch tile: as big as possible (cap TB_CAP), multiple of 8, but split
    # the batch into >= 2 tiles when it allows it so the "parallel" grid axis
    # actually uses both TensorCores on v7x.
    B8 = max(8, ((B + 7) // 8) * 8)
    if B8 <= 8:
        TB = 8
    else:
        TB = min(TB_CAP, (((B8 + 1) // 2) + 7) // 8 * 8)
    B_pad = ((B + TB - 1) // TB) * TB
    if B_pad != B:
        z = jnp.pad(z, ((0, B_pad - B), (0, 0)))

    grid = (B_pad // TB,)

    out = pl.pallas_call(
        sound_decoder_kernel,
        out_shape=jax.ShapeDtypeStruct((B_pad, LANES), jnp.bfloat16),
        grid_spec=pltpu.PrefetchScalarGridSpec(
            num_scalar_prefetch=0,
            grid=grid,
            in_specs=[
                pl.BlockSpec((TB, latent_dim), lambda i: (i, 0)),     # z tile
                pl.BlockSpec((latent_dim, LANES), lambda i: (0, 0)),  # w1 (resident)
                pl.BlockSpec((LANES, LANES), lambda i: (0, 0)),       # w2 (resident)
                pl.BlockSpec((LANES, LANES), lambda i: (0, 0)),       # w3 (resident)
                pl.BlockSpec((3, LANES), lambda i: (0, 0)),           # packed biases
            ],
            out_specs=pl.BlockSpec((TB, LANES), lambda i: (i, 0)),
        ),
        compiler_params=pltpu.CompilerParams(
            dimension_semantics=("parallel",)),
    )(z, prepped["w1"], prepped["w2"], prepped["w3"], prepped["b"])

    # Valid-lane slice + f32 cast + reshape in one small pass.
    # TODO(synk): for very large B, hand the padded bf16 slab to the consumer
    # and slice lazily there to avoid this second HBM pass. Padded lanes hold
    # sigmoid(0)=0.5 and must never be interpreted as data.
    out = out[:B, :OUT_DIM].astype(jnp.float32)
    return out.reshape(B, N_STACK, SOUND_CHANNELS, SOUND_LENGTH)


# -----------------------------------------------------------------------------
# Deterministic init mimicking PyTorch defaults (plus non-trivial BN stats)
# -----------------------------------------------------------------------------
def init_params(key, latent_dim):
    dims = {"fc1": (HIDDEN, latent_dim), "fc2": (HIDDEN, HIDDEN),
            "fc3": (OUT_DIM, HIDDEN)}
    params = {}
    for name, (out_d, in_d) in dims.items():
        key, kw, kb = jax.random.split(key, 3)
        bound = 1.0 / (in_d ** 0.5)
        params[name + "_w"] = jax.random.uniform(
            kw, (out_d, in_d), jnp.float32, minval=-bound, maxval=bound)
        params[name + "_b"] = jax.random.uniform(
            kb, (out_d,), jnp.float32, minval=-bound, maxval=bound)
    for bn in ("bn1", "bn2"):
        key, k1, k2, k3, k4 = jax.random.split(key, 5)
        params[bn + "_gamma"] = jax.random.uniform(k1, (HIDDEN,), jnp.float32, 0.5, 1.5)
        params[bn + "_beta"] = jax.random.uniform(k2, (HIDDEN,), jnp.float32, -0.5, 0.5)
        params[bn + "_mean"] = jax.random.uniform(k3, (HIDDEN,), jnp.float32, -0.5, 0.5)
        params[bn + "_var"] = jax.random.uniform(k4, (HIDDEN,), jnp.float32, 0.5, 1.5)
    return params


if __name__ == "__main__":
    batch = 8
    latent_dim = 16

    key = jax.random.PRNGKey(0)
    key, kz = jax.random.split(key)
    z = jax.random.normal(kz, (batch, latent_dim), jnp.float32)
    params = init_params(key, latent_dim)

    # Prep once (outside the per-call path — no per-call transposes/pads).
    prepped = prepare_params(params)

    fwd = jax.jit(sound_decoder_forward)
    out = fwd(z, prepped)
    jax.block_until_ready(out)

    # Pure-JAX f32 reference (inference-mode BatchNorm).
    def ref(z, p):
        def bn(x, g, b, m, v):
            return (x - m) / jnp.sqrt(v + BN_EPS) * g + b
        h = z @ p["fc1_w"].T + p["fc1_b"]
        h = jax.nn.relu(bn(h, p["bn1_gamma"], p["bn1_beta"],
                           p["bn1_mean"], p["bn1_var"]))
        h = h @ p["fc2_w"].T + p["fc2_b"]
        h = jax.nn.relu(bn(h, p["bn2_gamma"], p["bn2_beta"],
                           p["bn2_mean"], p["bn2_var"]))
        h = h @ p["fc3_w"].T + p["fc3_b"]
        return jax.nn.sigmoid(h).reshape(-1, N_STACK, SOUND_CHANNELS, SOUND_LENGTH)

    out_ref = ref(z, params)
    assert out.shape == (batch, N_STACK, SOUND_CHANNELS, SOUND_LENGTH)
    # bf16 matmul inputs / bf16 output / approx-reciprocal sigmoid -> relaxed tol.
    assert jnp.allclose(out, out_ref, atol=2e-2, rtol=2e-2)

    print("KERNEL_OK")
</pallas_src>

<mosaic_0001>
module attributes {stable_mosaic.version = 11 : i64} {
  func.func @sound_decoder_kernel(%arg0: i32, %arg1: memref<8x16xbf16, #tpu.memory_space<vmem>>, %arg2: memref<16x128xbf16, #tpu.memory_space<vmem>>, %arg3: memref<128x128xbf16, #tpu.memory_space<vmem>>, %arg4: memref<128x128xbf16, #tpu.memory_space<vmem>>, %arg5: memref<3x128xf32, #tpu.memory_space<vmem>>, %arg6: memref<8x128xbf16, #tpu.memory_space<vmem>>) attributes {dimension_semantics = [#tpu.dimension_semantics<parallel>], iteration_bounds = array<i64: 1>, scalar_prefetch = 0 : i64, scratch_operands = 0 : i64, tpu.core_type = #tpu.core_type<tc>, window_params = [{transform_indices = @transform_0, window_bounds = array<i64: 8, 16>}, {pipeline_mode = #tpu.pipeline_mode<synchronous>, transform_indices = @transform_1, window_bounds = array<i64: 16, 128>}, {pipeline_mode = #tpu.pipeline_mode<synchronous>, transform_indices = @transform_2, window_bounds = array<i64: 128, 128>}, {pipeline_mode = #tpu.pipeline_mode<synchronous>, transform_indices = @transform_3, window_bounds = array<i64: 128, 128>}, {pipeline_mode = #tpu.pipeline_mode<synchronous>, transform_indices = @transform_4, window_bounds = array<i64: 3, 128>}, {transform_indices = @transform_5, window_bounds = array<i64: 8, 128>}]} {
    %c0 = arith.constant 0 : index
    %c0_0 = arith.constant 0 : index
    %0 = vector.load %arg1[%c0, %c0_0] : memref<8x16xbf16, #tpu.memory_space<vmem>>, vector<8x16xbf16>
    %c0_1 = arith.constant 0 : index
    %c0_2 = arith.constant 0 : index
    %1 = vector.load %arg2[%c0_1, %c0_2] : memref<16x128xbf16, #tpu.memory_space<vmem>>, vector<16x128xbf16>
    %cst = arith.constant dense<0.000000e+00> : vector<8x128xf32>
    %2 = tpu.matmul %0, %1, %cst {dimension_numbers = #tpu.dot_dimension_numbers<[1], [0], [0], [1], [0, 0, 1, 1], [], []>} : vector<8x16xbf16>, vector<16x128xbf16>, vector<8x128xf32> -> vector<8x128xf32>
    %c0_3 = arith.constant 0 : index
    %c0_4 = arith.constant 0 : index
    %3 = vector.load %arg5[%c0_3, %c0_4] : memref<3x128xf32, #tpu.memory_space<vmem>>, vector<1x128xf32>
    %4 = vector.broadcast %3 : vector<1x128xf32> to vector<8x128xf32>
    %5 = arith.addf %2, %4 : vector<8x128xf32>
    %cst_5 = arith.constant 0.000000e+00 : f32
    %6 = vector.broadcast %cst_5 : f32 to vector<8x128xf32>
    %7 = arith.maximumf %5, %6 : vector<8x128xf32>
    %8 = arith.truncf %7 : vector<8x128xf32> to vector<8x128xbf16>
    %c0_6 = arith.constant 0 : index
    %c0_7 = arith.constant 0 : index
    %9 = vector.load %arg3[%c0_6, %c0_7] : memref<128x128xbf16, #tpu.memory_space<vmem>>, vector<128x128xbf16>
    %cst_8 = arith.constant dense<0.000000e+00> : vector<8x128xf32>
    %10 = tpu.matmul %8, %9, %cst_8 {dimension_numbers = #tpu.dot_dimension_numbers<[1], [0], [0], [1], [0, 0, 1, 1], [], []>} : vector<8x128xbf16>, vector<128x128xbf16>, vector<8x128xf32> -> vector<8x128xf32>
    %c1 = arith.constant 1 : index
    %c0_9 = arith.constant 0 : index
    %11 = vector.load %arg5[%c1, %c0_9] : memref<3x128xf32, #tpu.memory_space<vmem>>, vector<1x128xf32>
    %12 = vector.broadcast %11 : vector<1x128xf32> to vector<8x128xf32>
    %13 = arith.addf %10, %12 : vector<8x128xf32>
    %cst_10 = arith.constant 0.000000e+00 : f32
    %14 = vector.broadcast %cst_10 : f32 to vector<8x128xf32>
    %15 = arith.maximumf %13, %14 : vector<8x128xf32>
    %16 = arith.truncf %15 : vector<8x128xf32> to vector<8x128xbf16>
    %c0_11 = arith.constant 0 : index
    %c0_12 = arith.constant 0 : index
    %17 = vector.load %arg4[%c0_11, %c0_12] : memref<128x128xbf16, #tpu.memory_space<vmem>>, vector<128x128xbf16>
    %cst_13 = arith.constant dense<0.000000e+00> : vector<8x128xf32>
    %18 = tpu.matmul %16, %17, %cst_13 {dimension_numbers = #tpu.dot_dimension_numbers<[1], [0], [0], [1], [0, 0, 1, 1], [], []>} : vector<8x128xbf16>, vector<128x128xbf16>, vector<8x128xf32> -> vector<8x128xf32>
    %c2 = arith.constant 2 : index
    %c0_14 = arith.constant 0 : index
    %19 = vector.load %arg5[%c2, %c0_14] : memref<3x128xf32, #tpu.memory_space<vmem>>, vector<1x128xf32>
    %20 = vector.broadcast %19 : vector<1x128xf32> to vector<8x128xf32>
    %21 = arith.addf %18, %20 : vector<8x128xf32>
    %cst_15 = arith.constant 0.000000e+00 : f32
    %22 = vector.broadcast %cst_15 : f32 to vector<8x128xf32>
    %23 = arith.subf %22, %21 : vector<8x128xf32>
    %24 = math.exp %23 : vector<8x128xf32>
    %cst_16 = arith.constant 1.000000e+00 : f32
    %25 = vector.broadcast %cst_16 : f32 to vector<8x128xf32>
    %26 = arith.addf %25, %24 : vector<8x128xf32>
    %27 = tpu.reciprocal %26 {approx = true} : vector<8x128xf32> -> vector<8x128xf32>
    %28 = arith.truncf %27 : vector<8x128xf32> to vector<8x128xbf16>
    %c0_17 = arith.constant 0 : index
    %c0_18 = arith.constant 0 : index
    %29 = vector.load %arg6[%c0_17, %c0_18] : memref<8x128xbf16, #tpu.memory_space<vmem>>, vector<8x128xbf16>
    tpu.vector_store %arg6[%c0_17, %c0_18], %28 {strides = array<i32>} : memref<8x128xbf16, #tpu.memory_space<vmem>>, vector<8x128xbf16>,
    return
  }
  func.func @transform_0(%arg0: i32) -> (i32, i32) {
    %c0_i32 = arith.constant 0 : i32
    %c0_i32_0 = arith.constant 0 : i32
    return %arg0, %c0_i32 : i32, i32
  }
  func.func @transform_1(%arg0: i32) -> (i32, i32) {
    %c0_i32 = arith.constant 0 : i32
    %c0_i32_0 = arith.constant 0 : i32
    %c0_i32_1 = arith.constant 0 : i32
    return %c0_i32, %c0_i32_0 : i32, i32
  }
  func.func @transform_2(%arg0: i32) -> (i32, i32) {
    %c0_i32 = arith.constant 0 : i32
    %c0_i32_0 = arith.constant 0 : i32
    %c0_i32_1 = arith.constant 0 : i32
    return %c0_i32, %c0_i32_0 : i32, i32
  }
  func.func @transform_3(%arg0: i32) -> (i32, i32) {
    %c0_i32 = arith.constant 0 : i32
    %c0_i32_0 = arith.constant 0 : i32
    %c0_i32_1 = arith.constant 0 : i32
    return %c0_i32, %c0_i32_0 : i32, i32
  }
  func.func @transform_4(%arg0: i32) -> (i32, i32) {
    %c0_i32 = arith.constant 0 : i32
    %c0_i32_0 = arith.constant 0 : i32
    %c0_i32_1 = arith.constant 0 : i32
    return %c0_i32, %c0_i32_0 : i32, i32
  }
  func.func @transform_5(%arg0: i32) -> (i32, i32) {
    %c0_i32 = arith.constant 0 : i32
    %c0_i32_0 = arith.constant 0 : i32
    return %arg0, %c0_i32 : i32, i32
  }
}

</mosaic_0001>

<llo_original>
// kernel: sound_decoder_forward.1
$region0: #{sound_decoder_forward.1}
  #allocation0 [shape = 'u32[]', space=smem, size = 0x4, offset = 0x4, fixed_abs, tag = 'smem constant byte address 0x4 - core index']
  #allocation1 [shape = 'u32[72,128]{1,0:T(1,128)}', space=vmem, size = 0x9000, scoped, tag = 'internal scratch']
  %s0 = inlined_call_operand.vmem [shape: bf16[8,16], index: 0, kind: input, shape index: {}]
  %s1 = inlined_call_operand.vmem [shape: bf16[16,128], index: 1, kind: input, shape index: {}]
  %s2 = inlined_call_operand.hbm [shape: bf16[128,128], index: 2, kind: input, shape index: {}]
  %s3 = inlined_call_operand.hbm [shape: bf16[128,128], index: 3, kind: input, shape index: {}]
  %s4 = inlined_call_operand.vmem [shape: f32[3,128], index: 4, kind: input, shape index: {}]
  %s5 = inlined_call_operand.vmem [shape: bf16[8,128], index: 5, kind: output, shape index: {}]
  %s6 = sld [smem:[#allocation0]]
  $region38: #{sound_decoder_forward.1} parent=0
    _
  %s8 = ssub.s32 1, %s6
  %s9 = scalar_select 0, %s8, %s6
  $region1: #{sound_decoder_forward.1} parent=0
    #allocation2 [shape = 'u8[32768]{0}', space=vmem, size = 0x8000, scoped, tag = 'input window, operand 2, single buffered']
    #allocation3 [shape = 's32[1]{0}', space=sflag, size = 0x4, scoped, tag = 'scoped memory for sound_decoder_forward.1']
    #allocation4 [shape = 'u8[32768]{0}', space=vmem, size = 0x8000, scoped, tag = 'input window, operand 3, single buffered']
    #allocation5 [shape = 's32[1]{0}', space=sflag, size = 0x4, scoped, tag = 'scoped memory for sound_decoder_forward.1']
    %10 = vsyncpa [#allocation3], 0
    %11 = vsyncpa [#allocation5], 0
    // Predicated region
    $region2: #{sound_decoder_forward.1} parent=1 // pred_check
      _
    $region3: #{sound_decoder_forward.1} parent=1 // pred_check_branch
      %13 = sbr.rel (0) target = $region5
    $region4: #{sound_decoder_forward.1} parent=1 // pred_region
      _
    $region5: #{sound_decoder_forward.1} parent=1 // pred_fallthru
      _
    // Predicated region
    $region6: #{sound_decoder_forward.1} parent=1 // pred_check
      _
    $region7: #{sound_decoder_forward.1} parent=1 // pred_check_branch
      %15 = sbr.rel (0) target = $region9
    $region8: #{sound_decoder_forward.1} parent=1 // pred_region
      _
    $region9: #{sound_decoder_forward.1} parent=1 // pred_fallthru
      _
    // Predicated region
    $region10: #{sound_decoder_forward.1} parent=1 // pred_check
      _
    $region11: #{sound_decoder_forward.1} parent=1 // pred_check_branch
      %17 = sbr.rel (0) target = $region13
    $region12: #{sound_decoder_forward.1} parent=1 // pred_region
      %19 = vsyncadd [#allocation3], 0
      %s20 = sshll.u32 %s2, 4
      %s21 = int_to_ptr.hbm [resolvable:$true] %s20
      %s22 = sshll.u32 [#allocation2], 4
      %s23 = int_to_ptr.vmem [resolvable:$true] %s22
      %28 = dma.hbm_to_vmem [thread:$0]  %s21, 1024, %s23, [#allocation3], 64, 64, 4
    $region13: #{sound_decoder_forward.1} parent=1 // pred_fallthru
      _
    // Predicated region
    $region14: #{sound_decoder_forward.1} parent=1 // pred_check
      _
    $region15: #{sound_decoder_forward.1} parent=1 // pred_check_branch
      %30 = sbr.rel (0) target = $region17
    $region16: #{sound_decoder_forward.1} parent=1 // pred_region
      %32 = vsyncadd [#allocation5], 0
      %s33 = sshll.u32 %s3, 4
      %s34 = int_to_ptr.hbm [resolvable:$true] %s33
      %s35 = sshll.u32 [#allocation4], 4
      %s36 = int_to_ptr.vmem [resolvable:$true] %s35
      %41 = dma.hbm_to_vmem [thread:$0]  %s34, 1024, %s36, [#allocation5], 64, 64, 4
    $region17: #{sound_decoder_forward.1} parent=1 // pred_fallthru
      _
    // Predicated region
    $region18: #{sound_decoder_forward.1} parent=1 // pred_check
      _
    $region19: #{sound_decoder_forward.1} parent=1 // pred_check_branch
      %43 = sbr.rel (0) target = $region21
    $region20: #{sound_decoder_forward.1} parent=1 // pred_region
      _
    $region21: #{sound_decoder_forward.1} parent=1 // pred_fallthru
      _
    // Predicated region
    $region22: #{sound_decoder_forward.1} parent=1 // pred_check
      _
    $region23: #{sound_decoder_forward.1} parent=1 // pred_check_branch
      %45 = sbr.rel (0) target = $region25
    $region24: #{sound_decoder_forward.1} parent=1 // pred_region
      %47 = dma.done [#allocation3], 1024
    $region25: #{sound_decoder_forward.1} parent=1 // pred_fallthru
      _
    // Predicated region
    $region26: #{sound_decoder_forward.1} parent=1 // pred_check
      _
    $region27: #{sound_decoder_forward.1} parent=1 // pred_check_branch
      %49 = sbr.rel (0) target = $region29
    $region28: #{sound_decoder_forward.1} parent=1 // pred_region
      %51 = dma.done [#allocation5], 1024
    $region29: #{sound_decoder_forward.1} parent=1 // pred_fallthru
      _
    %v53 = vld [vmem:[%s0] sm:$0xf]
    %v54 = vld [vmem:[%s1] sm:$0xf]
    %v55 = vld [vmem:[%s1 + $0x4] sm:$0xf]
    %v56 = vld [vmem:[%s4] sm:$0x1]
    %v57 = vperm.slane %v56, 0
    %v60 = vunpack.c.l.b16 %v54
    %v61 = vunpack.c.l.b16 %v55
    %v62 = vpack.c.b16 %v61, %v60
    %vm64 = vcmask 130048
    %v66 = vsel %vm64, %v53, 0
    %68 = vmatpush.bf16.msra.mxu0 0
    %69 = vmatpush.bf16.msra.mxu0 0
    %70 = vmatpush.bf16.msra.mxu0 0
    %71 = vmatpush.bf16.msra.mxu0 0
    %72 = vmatpush.bf16.msra.mxu0 0
    %73 = vmatpush.bf16.msra.mxu0 0
    %74 = vmatpush.bf16.msra.mxu0 0
    %75 = vmatpush.bf16.msra.mxu0 %v62
    %76 = vmatmul.bf16.gmra.mxu0 %v66
    %v77 = vpop.f32.mrf.mxu0
    %v78 = vadd.f32 %v57, %v77
    %v79 = vpop.f32.mrf.mxu0
    %80 = vdwg.mxu0
    %v81 = vmax.f32 %v78, 0.0
    %v82 = vpack.c.bf16 %v81, %v81
    %v83 = vld [vmem:[#allocation2] sm:$0xf]
    %v84 = vld [vmem:[#allocation2 + $0x4] sm:$0xf]
    %v85 = vld [vmem:[#allocation2 + $0x8] sm:$0xf]
    %v86 = vld [vmem:[#allocation2 + $0xc] sm:$0xf]
    %v87 = vld [vmem:[#allocation2 + $0x10] sm:$0xf]
    %v88 = vld [vmem:[#allocation2 + $0x14] sm:$0xf]
    %v89 = vld [vmem:[#allocation2 + $0x18] sm:$0xf]
    %v90 = vld [vmem:[#allocation2 + $0x1c] sm:$0xf]
    %v91 = vld [vmem:[#allocation2 + $0x20] sm:$0xf]
    %v92 = vld [vmem:[#allocation2 + $0x24] sm:$0xf]
    %v93 = vld [vmem:[#allocation2 + $0x28] sm:$0xf]
    %v94 = vld [vmem:[#allocation2 + $0x2c] sm:$0xf]
    %v95 = vld [vmem:[#allocation2 + $0x30] sm:$0xf]
    %v96 = vld [vmem:[#allocation2 + $0x34] sm:$0xf]
    %v97 = vld [vmem:[#allocation2 + $0x38] sm:$0xf]
    %v98 = vld [vmem:[#allocation2 + $0x3c] sm:$0xf]
    %v99 = vld [vmem:[%s4 + $0x1] sm:$0x1]
    %v100 = vperm.slane %v99, 0
    %v117 = vunpack.c.l.b16 %v83
    %v118 = vunpack.c.l.b16 %v84
    %v119 = vunpack.c.l.b16 %v85
    %v120 = vunpack.c.l.b16 %v86
    %v121 = vunpack.c.l.b16 %v87
    %v122 = vunpack.c.l.b16 %v88
    %v123 = vunpack.c.l.b16 %v89
    %v124 = vunpack.c.l.b16 %v90
    %v125 = vunpack.c.l.b16 %v91
    %v126 = vunpack.c.l.b16 %v92
    %v127 = vunpack.c.l.b16 %v93
    %v128 = vunpack.c.l.b16 %v94
    %v129 = vunpack.c.l.b16 %v95
    %v130 = vunpack.c.l.b16 %v96
    %v131 = vunpack.c.l.b16 %v97
    %v132 = vunpack.c.l.b16 %v98
    %v133 = vpack.c.b16 %v118, %v117
    %v134 = vpack.c.b16 %v120, %v119
    %v135 = vpack.c.b16 %v122, %v121
    %v136 = vpack.c.b16 %v124, %v123
    %v137 = vpack.c.b16 %v126, %v125
    %v138 = vpack.c.b16 %v128, %v127
    %v139 = vpack.c.b16 %v130, %v129
    %v140 = vpack.c.b16 %v132, %v131
    %149 = vmatpush.bf16.msra.mxu0 %v140
    %150 = vmatpush.bf16.msra.mxu0 %v139
    %151 = vmatpush.bf16.msra.mxu0 %v138
    %152 = vmatpush.bf16.msra.mxu0 %v137
    %153 = vmatpush.bf16.msra.mxu0 %v136
    %154 = vmatpush.bf16.msra.mxu0 %v135
    %155 = vmatpush.bf16.msra.mxu0 %v134
    %156 = vmatpush.bf16.msra.mxu0 %v133
    %157 = vmatmul.bf16.gmra.mxu0 %v82
    %v158 = vpop.f32.mrf.mxu0
    %v159 = vadd.f32 %v100, %v158
    %v160 = vpop.f32.mrf.mxu0
    %161 = vdwg.mxu0
    %v162 = vmax.f32 %v159, 0.0
    %v163 = vpack.c.bf16 %v162, %v162
    %v164 = vld [vmem:[#allocation4] sm:$0xf]
    %v165 = vld [vmem:[#allocation4 + $0x4] sm:$0xf]
    %v166 = vld [vmem:[#allocation4 + $0x8] sm:$0xf]
    %v167 = vld [vmem:[#allocation4 + $0xc] sm:$0xf]
    %v168 = vld [vmem:[#allocation4 + $0x10] sm:$0xf]
    %v169 = vld [vmem:[#allocation4 + $0x14] sm:$0xf]
    %v170 = vld [vmem:[#allocation4 + $0x18] sm:$0xf]
    %v171 = vld [vmem:[#allocation4 + $0x1c] sm:$0xf]
    %v172 = vld [vmem:[#allocation4 + $0x20] sm:$0xf]
    %v173 = vld [vmem:[#allocation4 + $0x24] sm:$0xf]
    %v174 = vld [vmem:[#allocation4 + $0x28] sm:$0xf]
    %v175 = vld [vmem:[#allocation4 + $0x2c] sm:$0xf]
    %v176 = vld [vmem:[#allocation4 + $0x30] sm:$0xf]
    %v177 = vld [vmem:[#allocation4 + $0x34] sm:$0xf]
    %v178 = vld [vmem:[#allocation4 + $0x38] sm:$0xf]
    %v179 = vld [vmem:[#allocation4 + $0x3c] sm:$0xf]
    %v180 = vld [vmem:[%s4 + $0x2] sm:$0x1]
    %v181 = vperm.slane %v180, 0
    %v198 = vunpack.c.l.b16 %v164
    %v199 = vunpack.c.l.b16 %v165
    %v200 = vunpack.c.l.b16 %v166
    %v201 = vunpack.c.l.b16 %v167
    %v202 = vunpack.c.l.b16 %v168
    %v203 = vunpack.c.l.b16 %v169
    %v204 = vunpack.c.l.b16 %v170
    %v205 = vunpack.c.l.b16 %v171
    %v206 = vunpack.c.l.b16 %v172
    %v207 = vunpack.c.l.b16 %v173
    %v208 = vunpack.c.l.b16 %v174
    %v209 = vunpack.c.l.b16 %v175
    %v210 = vunpack.c.l.b16 %v176
    %v211 = vunpack.c.l.b16 %v177
    %v212 = vunpack.c.l.b16 %v178
    %v213 = vunpack.c.l.b16 %v179
    %v214 = vpack.c.b16 %v199, %v198
    %v215 = vpack.c.b16 %v201, %v200
    %v216 = vpack.c.b16 %v203, %v202
    %v217 = vpack.c.b16 %v205, %v204
    %v218 = vpack.c.b16 %v207, %v206
    %v219 = vpack.c.b16 %v209, %v208
    %v220 = vpack.c.b16 %v211, %v210
    %v221 = vpack.c.b16 %v213, %v212
    %230 = vmatpush.bf16.msra.mxu0 %v221
    %231 = vmatpush.bf16.msra.mxu0 %v220
    %232 = vmatpush.bf16.msra.mxu0 %v219
    %233 = vmatpush.bf16.msra.mxu0 %v218
    %234 = vmatpush.bf16.msra.mxu0 %v217
    %235 = vmatpush.bf16.msra.mxu0 %v216
    %236 = vmatpush.bf16.msra.mxu0 %v215
    %237 = vmatpush.bf16.msra.mxu0 %v214
    %238 = vmatmul.bf16.gmra.mxu0 %v163
    %v239 = vpop.f32.mrf.mxu0
    %v240 = vadd.f32 %v181, %v239
    %v241 = vpop.f32.mrf.mxu0
    %242 = vdwg.mxu0
    %v243 = vsub.f32 0.0, %v240
    %v244 = vmul.f32 %v243, 1.442695
    %v245 = vpow.pop %v244
    %v246 = vadd.f32 %v245, 1.0
    %v247 = vrcp.pop %v246
    %v248 = vpack.c.bf16 %v247, %v247
    %249 = vst [vmem:[%s5] sm:$0xf] %v248
    // Predicated region
    $region30: #{sound_decoder_forward.1} parent=1 // pred_check
      _
    $region31: #{sound_decoder_forward.1} parent=1 // pred_check_branch
      %251 = sbr.rel (0) target = $region33
    $region32: #{sound_decoder_forward.1} parent=1 // pred_region
      _
    $region33: #{sound_decoder_forward.1} parent=1 // pred_fallthru
      _
    // Predicated region
    $region34: #{sound_decoder_forward.1} parent=1 // pred_check
      _
    $region35: #{sound_decoder_forward.1} parent=1 // pred_check_branch
      %253 = sbr.rel (0) target = $region37
    $region36: #{sound_decoder_forward.1} parent=1 // pred_region
      _
    $region37: #{sound_decoder_forward.1} parent=1 // pred_fallthru
      _
    %254 = vsyncpa [#allocation3], 1
    %255 = vsyncpa [#allocation5], 1

</llo_original>
